<compile_context>
chip_gen: v7x
topology: tpu7x:2x2x1
jax: 0.10.0
libtpu: 0.0.40
codegen_flags: <defaults>
</compile_context>

<pallas_src>
import functools

import numpy as np
import jax
import jax.numpy as jnp
from jax import lax
from jax.experimental import pallas as pl
from jax.experimental.pallas import tpu as pltpu

EPS = 1e-7

# 48 MiB scoped VMEM: covers 1024-wide L tiles + the resident P/E operands and stays
# inside v7x's 64 MiB/TC physical VMEM (v5e/v6e have 128 MiB and could go higher).
_DEFAULT_VMEM_LIMIT = 48 * 1024 * 1024


def _round_up(x, m):
    return (x + m - 1) // m * m


def _choose_block(n, max_block=1024, max_pad_frac=0.09):
    """Largest 128*2^k tile such that (a) padding overshoot beyond the 128-padded size
    stays small and (b) the parallel grid axes keep >= 2 blocks (v7x megacore)."""
    n128 = _round_up(max(n, 1), 128)
    if n128 == 128:
        return 128, 128
    for cand in (1024, 512, 256):
        if cand > max_block or 2 * cand > n128:
            continue
        n_pad = _round_up(n, cand)
        if n_pad - n128 <= max_pad_frac * n128:
            return cand, n_pad
    return 128, n128


def _project_block(blk, d):
    """Row-block for the X @ W projection, keeping one (pblk, d) f32 X tile <= 8 MiB."""
    for cand in (1024, 512, 256, 128):
        if cand <= blk and cand * d * 4 <= 8 * 1024 * 1024:
            return cand
    return 128


# ---------------------------------------------------------------------------
# Stage 1: tiny dense projection  P1 = X @ W1   (grid over row blocks only)
# ---------------------------------------------------------------------------
def _project_kernel(x_ref, w_ref, out_ref):
    out_ref[...] = jnp.dot(
        x_ref[...], w_ref[...], preferred_element_type=jnp.float32
    ).astype(out_ref.dtype)


def _project(x, w, out_dtype, blk, vmem_limit_bytes):
    n_pad, d = x.shape
    h = w.shape[1]
    return pl.pallas_call(
        _project_kernel,
        out_shape=jax.ShapeDtypeStruct((n_pad, h), out_dtype),
        grid_spec=pltpu.PrefetchScalarGridSpec(
            num_scalar_prefetch=0,
            grid=(n_pad // blk,),
            in_specs=[
                pl.BlockSpec((blk, d), lambda i: (i, 0)),
                pl.BlockSpec((d, h), lambda i: (0, 0)),     # W: VMEM resident
            ],
            out_specs=pl.BlockSpec((blk, h), lambda i: (i, 0)),
        ),
        compiler_params=pltpu.CompilerParams(
            dimension_semantics=("parallel",),
            vmem_limit_bytes=vmem_limit_bytes,
        ),
    )(x, w)


# ---------------------------------------------------------------------------
# Stage 2a: layer-1 propagate with fused relu + second projection
#   P2_block = relu( sum_k L[i,k] @ P1[k] ) @ W2
#   grid = (row blocks i [parallel], contraction blocks k [arbitrary, last])
#   P1 and W2 are VMEM resident; f32 accumulator scratch; epilogue fused at last k.
# ---------------------------------------------------------------------------
def _gcn1_kernel(l_ref, p_ref, w2_ref, out_ref, acc_ref, *, blk):
    k = pl.program_id(1)

    @pl.when(k == 0)
    def _():
        acc_ref[...] = jnp.zeros_like(acc_ref)

    koff = pl.multiple_of(k * blk, blk)
    p_blk = p_ref[pl.ds(koff, blk), :]                       # resident P1 row slice
    acc_ref[...] += jnp.dot(l_ref[...], p_blk, preferred_element_type=jnp.float32)

    @pl.when(k == pl.num_programs(1) - 1)
    def _():
        h1 = jnp.maximum(acc_ref[...], 0.0)                  # relu, f32
        out_ref[...] = jnp.dot(
            h1, w2_ref[...], preferred_element_type=jnp.float32
        ).astype(out_ref.dtype)


def _gcn_layer1(lap, p1, w2, blk, out_dtype, vmem_limit_bytes):
    n_pad = lap.shape[0]
    h1 = p1.shape[1]
    h2 = w2.shape[1]
    kernel = functools.partial(_gcn1_kernel, blk=blk)
    return pl.pallas_call(
        kernel,
        out_shape=jax.ShapeDtypeStruct((n_pad, h2), out_dtype),
        grid_spec=pltpu.PrefetchScalarGridSpec(
            num_scalar_prefetch=0,
            grid=(n_pad // blk, n_pad // blk),
            in_specs=[
                pl.BlockSpec((blk, blk), lambda i, k: (i, k)),    # L tile (streamed)
                pl.BlockSpec((n_pad, h1), lambda i, k: (0, 0)),   # P1: VMEM resident
                pl.BlockSpec((h1, h2), lambda i, k: (0, 0)),      # W2: VMEM resident
            ],
            out_specs=pl.BlockSpec((blk, h2), lambda i, k: (i, 0)),
            scratch_shapes=[pltpu.VMEM((blk, h1), jnp.float32)],
        ),
        compiler_params=pltpu.CompilerParams(
            dimension_semantics=("parallel", "arbitrary"),
            vmem_limit_bytes=vmem_limit_bytes,
        ),
    )(lap, p1, w2)


# ---------------------------------------------------------------------------
# Stage 2b: layer-2 propagate with fused row normalization
#   E_block = rownorm( sum_k L[i,k] @ P2[k] )
#   Accumulates directly into the k-invariant out block (no scratch); the norm
#   epilogue (f32, exact sqrt + divide) runs at the last k.
# ---------------------------------------------------------------------------
def _gcn2_kernel(l_ref, p_ref, out_ref, *, blk):
    k = pl.program_id(1)

    @pl.when(k == 0)
    def _():
        out_ref[...] = jnp.zeros_like(out_ref)

    koff = pl.multiple_of(k * blk, blk)
    p_blk = p_ref[pl.ds(koff, blk), :]                       # resident P2 row slice
    out_ref[...] += jnp.dot(l_ref[...], p_blk, preferred_element_type=jnp.float32)

    @pl.when(k == pl.num_programs(1) - 1)
    def _():
        h = out_ref[...]
        nrm = jnp.sqrt(jnp.sum(h * h, axis=1, keepdims=True))
        out_ref[...] = h / jnp.maximum(nrm, EPS)             # matches norm.max(eps)


def _gcn_layer2(lap, p2, blk, vmem_limit_bytes):
    n_pad = lap.shape[0]
    h2 = p2.shape[1]
    kernel = functools.partial(_gcn2_kernel, blk=blk)
    return pl.pallas_call(
        kernel,
        out_shape=jax.ShapeDtypeStruct((n_pad, h2), jnp.float32),
        grid_spec=pltpu.PrefetchScalarGridSpec(
            num_scalar_prefetch=0,
            grid=(n_pad // blk, n_pad // blk),
            in_specs=[
                pl.BlockSpec((blk, blk), lambda i, k: (i, k)),    # L tile (streamed)
                pl.BlockSpec((n_pad, h2), lambda i, k: (0, 0)),   # P2: VMEM resident
            ],
            out_specs=pl.BlockSpec((blk, h2), lambda i, k: (i, 0)),
        ),
        compiler_params=pltpu.CompilerParams(
            dimension_semantics=("parallel", "arbitrary"),
            vmem_limit_bytes=vmem_limit_bytes,
        ),
    )(lap, p2)


# ---------------------------------------------------------------------------
# Stage 3: reconstruction  A_hat[i, j] = E_i @ E_j^T
#   i-operand: streamed row block (re-used across the whole inner j loop);
#   j-operand: E fully VMEM resident, row-sliced in-kernel.
#   Output emitted directly at (n, n): edge blocks are write-masked, so no
#   epilogue slice copy is needed.
# ---------------------------------------------------------------------------
def _recon_kernel(ei_ref, e_ref, out_ref, *, blk_n):
    j = pl.program_id(1)
    joff = pl.multiple_of(j * blk_n, blk_n)
    ej = e_ref[pl.ds(joff, blk_n), :]                        # resident E row slice
    out_ref[...] = lax.dot_general(
        ei_ref[...],
        ej,
        dimension_numbers=(((1,), (1,)), ((), ())),          # E_i @ E_j^T
        preferred_element_type=jnp.float32,
    ).astype(out_ref.dtype)


def _recon(e, n_out, blk, vmem_limit_bytes):
    n_pad, h = e.shape
    kernel = functools.partial(_recon_kernel, blk_n=blk)
    return pl.pallas_call(
        kernel,
        out_shape=jax.ShapeDtypeStruct((n_out, n_out), jnp.float32),
        grid_spec=pltpu.PrefetchScalarGridSpec(
            num_scalar_prefetch=0,
            grid=(n_pad // blk, n_pad // blk),
            in_specs=[
                pl.BlockSpec((blk, h), lambda i, j: (i, 0)),      # E row block (i)
                pl.BlockSpec((n_pad, h), lambda i, j: (0, 0)),    # E resident (j)
            ],
            out_specs=pl.BlockSpec((blk, blk), lambda i, j: (i, j)),
        ),
        compiler_params=pltpu.CompilerParams(
            dimension_semantics=("parallel", "parallel"),
            vmem_limit_bytes=vmem_limit_bytes,
        ),
    )(e, e)


# ---------------------------------------------------------------------------
# Full forward pass
# ---------------------------------------------------------------------------
def prepare_inputs(laplacian, x, *, block=1024, stream_dtype=jnp.bfloat16):
    """One-time padding / cast of the per-graph constants (L, X).

    L (and X) are constant across EGAE training iterations; the cast is done
    BEFORE the pad so the copies move half-width data, and doing it here lets a
    training loop amortize the prologue over all forward calls.
    """
    laplacian = jnp.asarray(laplacian)
    x = jnp.asarray(x, jnp.float32)
    n = x.shape[0]
    blk, n_pad = _choose_block(n, max_block=block)
    pad = n_pad - n
    lap_s = jnp.pad(laplacian.astype(stream_dtype), ((0, pad), (0, pad)))
    x_p = jnp.pad(x, ((0, pad), (0, 0)))
    return {
        "lap": lap_s,
        "x": x_p,
        "n": n,
        "n_pad": n_pad,
        "blk": blk,
        "stream_dtype": stream_dtype,
    }


def egae_forward_prepared(prep, w1, w2, *, vmem_limit_bytes=_DEFAULT_VMEM_LIMIT):
    lap, x_p = prep["lap"], prep["x"]
    n, blk = prep["n"], prep["blk"]
    sdt = prep["stream_dtype"]
    w1 = jnp.asarray(w1, jnp.float32)
    w2 = jnp.asarray(w2, jnp.float32)
    d = x_p.shape[1]

    pblk = _project_block(blk, d)

    # P1 = X @ W1
    p1 = _project(x_p, w1, sdt, pblk, vmem_limit_bytes)
    # P2 = relu(L @ P1) @ W2   (fused second projection)
    p2 = _gcn_layer1(lap, p1, w2, blk, sdt, vmem_limit_bytes)
    # E = rownorm(L @ P2)
    # TODO(synk): the final activation in the PyTorch module is the F.linear
    # placeholder; treated as identity, matching the reference implementation.
    e = _gcn_layer2(lap, p2, blk, vmem_limit_bytes)
    # A_hat = E @ E^T, emitted directly at (n, n)
    return _recon(e, n, blk, vmem_limit_bytes)


def egae_forward(
    laplacian,
    x,
    w1,
    w2,
    *,
    block=1024,
    stream_dtype=jnp.bfloat16,
    vmem_limit_bytes=_DEFAULT_VMEM_LIMIT,
):
    prep = prepare_inputs(laplacian, x, block=block, stream_dtype=stream_dtype)
    return egae_forward_prepared(prep, w1, w2, vmem_limit_bytes=vmem_limit_bytes)


# ---------------------------------------------------------------------------
# Glue (plain JAX / numpy) matching the PyTorch helpers
# ---------------------------------------------------------------------------
def get_laplacian(a):
    """D^{-1/2} (A + I) D^{-1/2}, matching get_Laplacian."""
    n = a.shape[0]
    l = a + jnp.eye(n, dtype=a.dtype)
    d = l.sum(axis=1)
    sqrt_d = d ** (-0.5)
    return sqrt_d * (sqrt_d * l).T


def get_weight_initial(key, shape):
    """Uniform(-bound, bound), bound = sqrt(6/(fan_in+fan_out))."""
    bound = np.sqrt(6.0 / (shape[0] + shape[1]))
    return jax.random.uniform(key, shape, jnp.float32, -bound, bound)


def reference_forward_np(laplacian, x, w1, w2):
    """float64 numpy reference of EGAE.forward."""
    L = np.asarray(laplacian, np.float64)
    X = np.asarray(x, np.float64)
    W1 = np.asarray(w1, np.float64)
    W2 = np.asarray(w2, np.float64)
    h = np.maximum(L @ (X @ W1), 0.0)
    h = L @ (h @ W2)
    norm = np.maximum(np.linalg.norm(h, axis=1, keepdims=True), EPS)
    e = h / norm
    return e @ e.T


if __name__ == "__main__":
    # Small shapes consistent with the module defaults: layers = [32, 16].
    # N=200 -> 128-block tiling, padded N=256, 2x2 propagate/recon grids, and a
    # partially-masked (n, n) recon output, so padding handling, the resident
    # accumulator path and the fused epilogues are all exercised.
    N, D = 200, 32
    H1, H2 = 32, 16

    key = jax.random.PRNGKey(0)
    k_x, k_a, k_w1, k_w2 = jax.random.split(key, 4)

    X = jax.random.normal(k_x, (N, D), jnp.float32)
    # symmetric {0,1} adjacency with empty diagonal
    A_raw = (jax.random.uniform(k_a, (N, N)) < 0.1).astype(jnp.float32)
    A = jnp.maximum(A_raw, A_raw.T) * (1.0 - jnp.eye(N, dtype=jnp.float32))

    W1 = get_weight_initial(k_w1, (D, H1))
    W2 = get_weight_initial(k_w2, (H1, H2))

    L = get_laplacian(A)
    ref = reference_forward_np(L, X, W1, W2)

    # f32 streamed path: tight check against the float64 reference.
    recons_f32 = jax.block_until_ready(
        egae_forward(L, X, W1, W2, stream_dtype=jnp.float32)
    )
    assert recons_f32.shape == (N, N)
    np.testing.assert_allclose(np.asarray(recons_f32), ref, atol=5e-4, rtol=5e-4)

    # Default path: bf16-streamed L / P (f32 MXU accumulation, f32 epilogues),
    # using the one-time prepared (pad + cast) inputs as a training loop would.
    prep = prepare_inputs(L, X)
    recons_bf16 = jax.block_until_ready(egae_forward_prepared(prep, W1, W2))
    assert recons_bf16.shape == (N, N)
    np.testing.assert_allclose(np.asarray(recons_bf16), ref, atol=8e-2, rtol=0)

    print("KERNEL_OK")
</pallas_src>

<mosaic_0001>
module attributes {stable_mosaic.version = 11 : i64} {
  func.func @_project_kernel(%arg0: i32, %arg1: memref<128x32xf32, #tpu.memory_space<vmem>>, %arg2: memref<32x32xf32, #tpu.memory_space<vmem>>, %arg3: memref<128x32xf32, #tpu.memory_space<vmem>>) attributes {dimension_semantics = [#tpu.dimension_semantics<parallel>], iteration_bounds = array<i64: 2>, scalar_prefetch = 0 : i64, scratch_operands = 0 : i64, tpu.core_type = #tpu.core_type<tc>, window_params = [{transform_indices = @transform_0, window_bounds = array<i64: 128, 32>}, {pipeline_mode = #tpu.pipeline_mode<synchronous>, transform_indices = @transform_1, window_bounds = array<i64: 32, 32>}, {transform_indices = @transform_2, window_bounds = array<i64: 128, 32>}]} {
    %c0 = arith.constant 0 : index
    %c0_0 = arith.constant 0 : index
    %0 = vector.load %arg1[%c0, %c0_0] : memref<128x32xf32, #tpu.memory_space<vmem>>, vector<128x32xf32>
    %c0_1 = arith.constant 0 : index
    %c0_2 = arith.constant 0 : index
    %1 = vector.load %arg2[%c0_1, %c0_2] : memref<32x32xf32, #tpu.memory_space<vmem>>, vector<32x32xf32>
    %cst = arith.constant dense<0.000000e+00> : vector<128x32xf32>
    %2 = tpu.matmul %0, %1, %cst {dimension_numbers = #tpu.dot_dimension_numbers<[1], [0], [0], [1], [0, 0, 1, 1], [], []>} : vector<128x32xf32>, vector<32x32xf32>, vector<128x32xf32> -> vector<128x32xf32>
    %c0_3 = arith.constant 0 : index
    %c0_4 = arith.constant 0 : index
    %3 = vector.load %arg3[%c0_3, %c0_4] : memref<128x32xf32, #tpu.memory_space<vmem>>, vector<128x32xf32>
    tpu.vector_store %arg3[%c0_3, %c0_4], %2 {strides = array<i32>} : memref<128x32xf32, #tpu.memory_space<vmem>>, vector<128x32xf32>,
    return
  }
  func.func @transform_0(%arg0: i32) -> (i32, i32) {
    %c0_i32 = arith.constant 0 : i32
    %c0_i32_0 = arith.constant 0 : i32
    return %arg0, %c0_i32 : i32, i32
  }
  func.func @transform_1(%arg0: i32) -> (i32, i32) {
    %c0_i32 = arith.constant 0 : i32
    %c0_i32_0 = arith.constant 0 : i32
    %c0_i32_1 = arith.constant 0 : i32
    return %c0_i32, %c0_i32_0 : i32, i32
  }
  func.func @transform_2(%arg0: i32) -> (i32, i32) {
    %c0_i32 = arith.constant 0 : i32
    %c0_i32_0 = arith.constant 0 : i32
    return %arg0, %c0_i32 : i32, i32
  }
}

</mosaic_0001>

<llo_original>
// kernel: tpu_custom_call.1
$region0: #{tpu_custom_call.1}
  #allocation0 [shape = 'u32[]', space=smem, size = 0x4, offset = 0x4, fixed_abs, tag = 'smem constant byte address 0x4 - core index']
  #allocation1 [shape = 'u32[144,128]{1,0:T(1,128)}', space=vmem, size = 0x12000, scoped, tag = 'internal scratch']
  %s0 = inlined_call_operand.vmem [shape: f32[256,32], index: 0, kind: input, shape index: {}]
  %s1 = inlined_call_operand.vmem [shape: f32[32,32], index: 1, kind: input, shape index: {}]
  %s2 = inlined_call_operand.vmem [shape: f32[256,32], index: 2, kind: output, shape index: {}]
  %s3 = sld [smem:[#allocation0]]
  $region41: #{tpu_custom_call.1} parent=0
    _
  %s5 = ssub.s32 1, %s3
  %s6 = scalar_select 0, %s5, %s3
  loop: start=0, step=1, limit=4
  $region2: #{tpu_custom_call.1} parent=0 // loop_pre_header
    _
  $region3: #{tpu_custom_call.1} parent=0 // loop_header
    %s8 = sphi 0, %s12
    %p9 = scmp.ge.s32.totalorder %s8, 4
    %s18 = sphi 0, %s20
    %s21 = sphi 0, %s18
    %s22 = sphi 0, %s21
    %s38 = sphi 0, %s22
    %s42 = sphi 0, %s42
    %s44 = sphi 0, %s42
    %s45 = sphi 0, %s44
    %s59 = sphi 0, %s45
    %s65 = sphi 0, %s67
    %s68 = sphi 0, %s65
    %s69 = sphi 0, %s68
    %s85 = sphi 0, %s69
  $region4: #{tpu_custom_call.1} parent=0 // loop_header_branch
    %11 = sbr.rel (%p9) target = $region8
  $region5: #{tpu_custom_call.1} parent=0 // loop_body
    %s13 = ssub.s32 %s8, 1
    %s14 = ssub.s32 %s8, 2
    %s15 = sadd.s32 %s8, 1
    %s16 = ssub.s32 %s8, %s15
    %p17 = scmp.eq.s32.totalorder %s16, 0
    %s19 = sadd.s32 %s18, 1
    %s20 = scalar_select %p17, %s18, %s19
    %p23 = pneg %p17
    %p24 = scmp.eq.s32.totalorder %s8, 1
    %p25 = por %p23, %p24
    %p26 = scmp.ne.s32.totalorder %s18, %s21
    %p27 = scmp.eq.s32.totalorder %s8, 0
    %p28 = por %p26, %p27
    %p29 = scmp.ne.s32.totalorder %s18, %s21
    %p30 = scmp.eq.s32.totalorder %s13, 1
    %p31 = por %p29, %p30
    %p32 = scmp.ne.s32.totalorder %s21, %s22
    %p33 = scmp.eq.s32.totalorder %s13, 0
    %p34 = por %p32, %p33
    %p35 = scmp.ne.s32.totalorder %s21, %s22
    %p36 = scmp.eq.s32.totalorder %s14, 1
    %p37 = por %p35, %p36
    %p39 = scmp.ne.s32.totalorder %s22, %s38
    %p40 = scmp.eq.s32.totalorder %s14, 0
    %p41 = por %p39, %p40
    %s43 = sadd.s32 %s42, 1
    %p46 = scmp.eq.s32.totalorder %s8, 1
    %p47 = scmp.ne.s32.totalorder %s42, %s44
    %p48 = scmp.eq.s32.totalorder %s8, 0
    %p49 = por %p47, %p48
    %p50 = scmp.ne.s32.totalorder %s42, %s44
    %p51 = scmp.eq.s32.totalorder %s13, 1
    %p52 = por %p50, %p51
    %p53 = scmp.ne.s32.totalorder %s44, %s45
    %p54 = scmp.eq.s32.totalorder %s13, 0
    %p55 = por %p53, %p54
    %p56 = scmp.ne.s32.totalorder %s44, %s45
    %p57 = scmp.eq.s32.totalorder %s14, 1
    %p58 = por %p56, %p57
    %p60 = scmp.ne.s32.totalorder %s45, %s59
    %p61 = scmp.eq.s32.totalorder %s14, 0
    %p62 = por %p60, %p61
    %s63 = ssub.s32 %s8, %s15
    %p64 = scmp.eq.s32.totalorder %s63, 0
    %s66 = sadd.s32 %s65, 1
    %s67 = scalar_select %p64, %s65, %s66
    %p70 = pneg %p64
    %p71 = scmp.eq.s32.totalorder %s8, 1
    %p72 = por %p70, %p71
    %p73 = scmp.ne.s32.totalorder %s65, %s68
    %p74 = scmp.eq.s32.totalorder %s8, 0
    %p75 = por %p73, %p74
    %p76 = scmp.ne.s32.totalorder %s65, %s68
    %p77 = scmp.eq.s32.totalorder %s13, 1
    %p78 = por %p76, %p77
    %p79 = scmp.ne.s32.totalorder %s68, %s69
    %p80 = scmp.eq.s32.totalorder %s13, 0
    %p81 = por %p79, %p80
    %p82 = scmp.ne.s32.totalorder %s68, %s69
    %p83 = scmp.eq.s32.totalorder %s14, 1
    %p84 = por %p82, %p83
    %p86 = scmp.ne.s32.totalorder %s69, %s85
    %p87 = scmp.eq.s32.totalorder %s14, 0
    %p88 = por %p86, %p87
    %p89 = scmp.le.s32.totalorder 1, %s8
    %p90 = scmp.lt.s32.totalorder %s8, 3
    %p91 = pnand %p89, %p90
    %p92 = pneg %p91
    // Predicated region
    $region9: #{tpu_custom_call.1} parent=5 // pred_check
      _
    $region10: #{tpu_custom_call.1} parent=5 // pred_check_branch
      %94 = sbr.rel (%p91) target = $region12
    $region11: #{tpu_custom_call.1} parent=5 // pred_region
      %s95 = ssub.s32 %s8, 1
      // Predicated region
      $region13: #{tpu_custom_call.1} parent=11 // pred_check
        %p96 = pneg %p55
      $region14: #{tpu_custom_call.1} parent=11 // pred_check_branch
        %98 = sbr.rel (%p96) target = $region16
      $region15: #{tpu_custom_call.1} parent=11 // pred_region
        _
      $region16: #{tpu_custom_call.1} parent=11 // pred_fallthru
        _
    $region12: #{tpu_custom_call.1} parent=5 // pred_fallthru
      _
    %p99 = scmp.lt.s32.totalorder %s8, 2
    // Predicated region
    $region17: #{tpu_custom_call.1} parent=5 // pred_check
      %p100 = pneg %p99
    $region18: #{tpu_custom_call.1} parent=5 // pred_check_branch
      %102 = sbr.rel (%p100) target = $region20
    $region19: #{tpu_custom_call.1} parent=5 // pred_region
      // Predicated region
      $region21: #{tpu_custom_call.1} parent=19 // pred_check
        %p103 = pneg %p28
      $region22: #{tpu_custom_call.1} parent=19 // pred_check_branch
        %105 = sbr.rel (%p103) target = $region24
      $region23: #{tpu_custom_call.1} parent=19 // pred_region
        %s106 = smul.u32 16, %s8
        %p107 = scmp.lt.s32.totalorder %s106, 31
        %s108 = scalar_select %p107, %s106, 31
        %s109 = smul.addr %s108, 8
        %s110 = scalar_lea.vmem %s0, %s109
        %s111 = smul.u32 16, %s8
      $region24: #{tpu_custom_call.1} parent=19 // pred_fallthru
        _
    $region20: #{tpu_custom_call.1} parent=5 // pred_fallthru
      _
    %p112 = scmp.le.s32.totalorder 1, %s8
    %p113 = scmp.lt.s32.totalorder %s8, 3
    %p114 = pnand %p112, %p113
    %p115 = pneg %p114
    // Predicated region
    $region25: #{tpu_custom_call.1} parent=5 // pred_check
      _
    $region26: #{tpu_custom_call.1} parent=5 // pred_check_branch
      %117 = sbr.rel (%p114) target = $region28
    $region27: #{tpu_custom_call.1} parent=5 // pred_region
      %s118 = ssub.s32 %s8, 1
      %s119 = smul.u32 16, %s13
      %p120 = scmp.lt.s32.totalorder %s119, 31
      %s121 = scalar_select %p120, %s119, 31
      %s122 = smul.addr %s121, 8
      %s123 = scalar_lea.vmem %s0, %s122
      %p124 = pneg %p34
      %p125 = pneg %p31
      %p126 = pneg %p55
      %p127 = pneg %p52
      %p128 = pneg %p81
      %p129 = pneg %p78
      %s130 = smul.u32 16, %s13
      %p131 = scmp.lt.s32.totalorder %s130, 31
      %s132 = scalar_select %p131, %s130, 31
      %s133 = smul.addr %s132, 8
      %s134 = scalar_lea.vmem %s2, %s133
      %s135 = smul.u32 16, %s13
      %p136 = scmp.lt.s32.totalorder %s135, 31
      %s137 = scalar_select %p136, %s135, 31
      %s138 = smul.addr %s137, 8
      %s139 = scalar_lea.vmem %s0, %s138
      %s140 = smul.u32 16, %s13
      %s141 = smul.u32 16, %s13
      %p142 = scmp.lt.s32.totalorder %s141, 31
      %s143 = scalar_select %p142, %s141, 31
      %s144 = smul.addr %s143, 8
      %s145 = scalar_lea.vmem %s2, %s144
      %s146 = smul.u32 16, %s13
      %v147 = vld [vmem:[%s139] sm:$0xff]
      %v148 = vld [vmem:[%s139 + $0x8] sm:$0xff]
      %v149 = vld [vmem:[%s139 + $0x10] sm:$0xff]
      %v150 = vld [vmem:[%s139 + $0x18] sm:$0xff]
      %v151 = vld [vmem:[%s139 + $0x20] sm:$0xff]
      %v152 = vld [vmem:[%s139 + $0x28] sm:$0xff]
      %v153 = vld [vmem:[%s139 + $0x30] sm:$0xff]
      %v154 = vld [vmem:[%s139 + $0x38] sm:$0xff]
      %v155 = vld [vmem:[%s139 + $0x40] sm:$0xff]
      %v156 = vld [vmem:[%s139 + $0x48] sm:$0xff]
      %v157 = vld [vmem:[%s139 + $0x50] sm:$0xff]
      %v158 = vld [vmem:[%s139 + $0x58] sm:$0xff]
      %v159 = vld [vmem:[%s139 + $0x60] sm:$0xff]
      %v160 = vld [vmem:[%s139 + $0x68] sm:$0xff]
      %v161 = vld [vmem:[%s139 + $0x70] sm:$0xff]
      %v162 = vld [vmem:[%s139 + $0x78] sm:$0xff]
      %v163 = vld [vmem:[%s1] sm:$0xff]
      %v164 = vld [vmem:[%s1 + $0x8] sm:$0xff]
      %v165 = vld [vmem:[%s1 + $0x10] sm:$0xff]
      %v166 = vld [vmem:[%s1 + $0x18] sm:$0xff]
      %vm167 = vcmask 261120
      %v169 = vsel %vm167, %v147, 0
      %v172 = vsel %vm167, %v148, 0
      %v175 = vsel %vm167, %v149, 0
      %v178 = vsel %vm167, %v150, 0
      %v181 = vsel %vm167, %v151, 0
      %v184 = vsel %vm167, %v152, 0
      %v187 = vsel %vm167, %v153, 0
      %v190 = vsel %vm167, %v154, 0
      %v193 = vsel %vm167, %v155, 0
      %v196 = vsel %vm167, %v156, 0
      %v199 = vsel %vm167, %v157, 0
      %v202 = vsel %vm167, %v158, 0
      %v205 = vsel %vm167, %v159, 0
      %v208 = vsel %vm167, %v160, 0
      %v211 = vsel %vm167, %v161, 0
      %v214 = vsel %vm167, %v162, 0
      %216 = vmatprep.subr.mxu0 0.0
      %217 = vmatpush1.msra.mxu0 %v163
      %218 = vmatprep.subr.mxu0 0.0
      %219 = vmatpush1.msra.mxu0 %v164
      %220 = vmatprep.subr.mxu0 0.0
      %221 = vmatpush1.msra.mxu0 %v165
      %222 = vmatprep.subr.mxu0 0.0
      %223 = vmatpush1.msra.mxu0 %v166
      %224 = vmatprep.subr.mxu0 0.0
      %225 = vmatpush1.msra.mxu0 0.0
      %226 = vmatprep.subr.mxu0 0.0
      %227 = vmatpush1.msra.mxu0 0.0
      %228 = vmatprep.subr.mxu0 0.0
      %229 = vmatpush1.msra.mxu0 0.0
      %230 = vmatprep.subr.mxu0 0.0
      %231 = vmatpush1.msra.mxu0 0.0
      %232 = vmatprep.subr.mxu0 0.0
      %233 = vmatpush1.msra.mxu0 0.0
      %234 = vmatprep.subr.mxu0 0.0
      %235 = vmatpush1.msra.mxu0 0.0
      %236 = vmatprep.subr.mxu0 0.0
      %237 = vmatpush1.msra.mxu0 0.0
      %238 = vmatprep.subr.mxu0 0.0
      %239 = vmatpush1.msra.mxu0 0.0
      %240 = vmatprep.subr.mxu0 0.0
      %241 = vmatpush1.msra.mxu0 0.0
      %242 = vmatprep.subr.mxu0 0.0
      %243 = vmatpush1.msra.mxu0 0.0
      %244 = vmatprep.subr.mxu0 0.0
      %245 = vmatpush1.msra.mxu0 0.0
      %246 = vmatprep.subr.mxu0 0.0
      %247 = vmatpush1.msra.mxu0 0.0
      %248 = vmatprep.subr.mxu0 0.0
      %249 = vmatpush1.msra.mxu0 0.0
      %250 = vmatprep.subr.mxu0 0.0
      %251 = vmatpush1.msra.mxu0 0.0
      %252 = vmatprep.subr.mxu0 0.0
      %253 = vmatpush1.msra.mxu0 0.0
      %254 = vmatprep.subr.mxu0 0.0
      %255 = vmatpush1.msra.mxu0 0.0
      %256 = vmatprep.subr.mxu0 0.0
      %257 = vmatpush1.msra.mxu0 0.0
      %258 = vmatprep.subr.mxu0 0.0
      %259 = vmatpush1.msra.mxu0 0.0
      %260 = vmatprep.subr.mxu0 0.0
      %261 = vmatpush1.msra.mxu0 0.0
      %262 = vmatprep.subr.mxu0 0.0
      %263 = vmatpush1.msra.mxu0 0.0
      %264 = vmatprep.subr.mxu0 0.0
      %265 = vmatpush1.msra.mxu0 0.0
      %266 = vmatprep.subr.mxu0 0.0
      %267 = vmatpush1.msra.mxu0 0.0
      %268 = vmatprep.subr.mxu0 0.0
      %269 = vmatpush1.msra.mxu0 0.0
      %270 = vmatprep.subr.mxu0 0.0
      %271 = vmatpush1.msra.mxu0 0.0
      %272 = vmatprep.subr.mxu0 0.0
      %273 = vmatpush1.msra.mxu0 0.0
      %274 = vmatprep.subr.mxu0 0.0
      %275 = vmatpush1.msra.mxu0 0.0
      %276 = vmatprep.subr.mxu0 0.0
      %277 = vmatpush1.msra.mxu0 0.0
      %278 = vmatprep.subr.mxu0 0.0
      %279 = vmatpush1.msra.mxu0 0.0
      %280 = vmatprep.mubr.f32.mxu0 0.0
      %281 = vmatmul.mubr.f32.gmra.mrb[0].mxu0 %v169
      %v282 = vpop.f32.mrb[0].mxu0
      %v283 = vadd.f32 0.0, %v282
      %v284 = vpop.f32.mrb[0].mxu0
      %285 = vmatprep.mubr.f32.mxu0 0.0
      %286 = vmatmul.mubr.f32.gmra.mrb[0].mxu0 %v172
      %v287 = vpop.f32.mrb[0].mxu0
      %v288 = vadd.f32 0.0, %v287
      %v289 = vpop.f32.mrb[0].mxu0
      %290 = vmatprep.mubr.f32.mxu0 0.0
      %291 = vmatmul.mubr.f32.gmra.mrb[0].mxu0 %v175
      %v292 = vpop.f32.mrb[0].mxu0
      %v293 = vadd.f32 0.0, %v292
      %v294 = vpop.f32.mrb[0].mxu0
      %295 = vmatprep.mubr.f32.mxu0 0.0
      %296 = vmatmul.mubr.f32.gmra.mrb[0].mxu0 %v178
      %v297 = vpop.f32.mrb[0].mxu0
      %v298 = vadd.f32 0.0, %v297
      %v299 = vpop.f32.mrb[0].mxu0
      %300 = vmatprep.mubr.f32.mxu0 0.0
      %301 = vmatmul.mubr.f32.gmra.mrb[0].mxu0 %v181
      %v302 = vpop.f32.mrb[0].mxu0
      %v303 = vadd.f32 0.0, %v302
      %v304 = vpop.f32.mrb[0].mxu0
      %305 = vmatprep.mubr.f32.mxu0 0.0
      %306 = vmatmul.mubr.f32.gmra.mrb[0].mxu0 %v184
      %v307 = vpop.f32.mrb[0].mxu0
      %v308 = vadd.f32 0.0, %v307
      %v309 = vpop.f32.mrb[0].mxu0
      %310 = vmatprep.mubr.f32.mxu0 0.0
      %311 = vmatmul.mubr.f32.gmra.mrb[0].mxu0 %v187
      %v312 = vpop.f32.mrb[0].mxu0
      %v313 = vadd.f32 0.0, %v312
      %v314 = vpop.f32.mrb[0].mxu0
      %315 = vmatprep.mubr.f32.mxu0 0.0
      %316 = vmatmul.mubr.f32.gmra.mrb[0].mxu0 %v190
      %v317 = vpop.f32.mrb[0].mxu0
      %v318 = vadd.f32 0.0, %v317
      %v319 = vpop.f32.mrb[0].mxu0
      %320 = vmatprep.mubr.f32.mxu0 0.0
      %321 = vmatmul.mubr.f32.gmra.mrb[0].mxu0 %v193
      %v322 = vpop.f32.mrb[0].mxu0
      %v323 = vadd.f32 0.0, %v322
      %v324 = vpop.f32.mrb[0].mxu0
      %325 = vmatprep.mubr.f32.mxu0 0.0
      %326 = vmatmul.mubr.f32.gmra.mrb[0].mxu0 %v196
      %v327 = vpop.f32.mrb[0].mxu0
      %v328 = vadd.f32 0.0, %v327
      %v329 = vpop.f32.mrb[0].mxu0
      %330 = vmatprep.mubr.f32.mxu0 0.0
      %331 = vmatmul.mubr.f32.gmra.mrb[0].mxu0 %v199
      %v332 = vpop.f32.mrb[0].mxu0
      %v333 = vadd.f32 0.0, %v332
      %v334 = vpop.f32.mrb[0].mxu0
      %335 = vmatprep.mubr.f32.mxu0 0.0
      %336 = vmatmul.mubr.f32.gmra.mrb[0].mxu0 %v202
      %v337 = vpop.f32.mrb[0].mxu0
      %v338 = vadd.f32 0.0, %v337
      %v339 = vpop.f32.mrb[0].mxu0
      %340 = vmatprep.mubr.f32.mxu0 0.0
      %341 = vmatmul.mubr.f32.gmra.mrb[0].mxu0 %v205
      %v342 = vpop.f32.mrb[0].mxu0
      %v343 = vadd.f32 0.0, %v342
      %v344 = vpop.f32.mrb[0].mxu0
      %345 = vmatprep.mubr.f32.mxu0 0.0
      %346 = vmatmul.mubr.f32.gmra.mrb[0].mxu0 %v208
      %v347 = vpop.f32.mrb[0].mxu0
      %v348 = vadd.f32 0.0, %v347
      %v349 = vpop.f32.mrb[0].mxu0
      %350 = vmatprep.mubr.f32.mxu0 0.0
      %351 = vmatmul.mubr.f32.gmra.mrb[0].mxu0 %v211
      %v352 = vpop.f32.mrb[0].mxu0
      %v353 = vadd.f32 0.0, %v352
      %v354 = vpop.f32.mrb[0].mxu0
      %355 = vmatprep.mubr.f32.mxu0 0.0
      %356 = vmatmul.mubr.f32.gmra.mrb[0].mxu0 %v214
      %v357 = vpop.f32.mrb[0].mxu0
      %v358 = vadd.f32 0.0, %v357
      %v359 = vpop.f32.mrb[0].mxu0
      %360 = vdwg.mxu0
      %361 = vst.msk [vmem:[%s145] sm:$0xff] %vm167, %v283
      %362 = vst.msk [vmem:[%s145 + $0x8] sm:$0xff] %vm167, %v288
      %363 = vst.msk [vmem:[%s145 + $0x10] sm:$0xff] %vm167, %v293
      %364 = vst.msk [vmem:[%s145 + $0x18] sm:$0xff] %vm167, %v298
      %365 = vst.msk [vmem:[%s145 + $0x20] sm:$0xff] %vm167, %v303
      %366 = vst.msk [vmem:[%s145 + $0x28] sm:$0xff] %vm167, %v308
      %367 = vst.msk [vmem:[%s145 + $0x30] sm:$0xff] %vm167, %v313
      %368 = vst.msk [vmem:[%s145 + $0x38] sm:$0xff] %vm167, %v318
      %369 = vst.msk [vmem:[%s145 + $0x40] sm:$0xff] %vm167, %v323
      %370 = vst.msk [vmem:[%s145 + $0x48] sm:$0xff] %vm167, %v328
      %371 = vst.msk [vmem:[%s145 + $0x50] sm:$0xff] %vm167, %v333
      %372 = vst.msk [vmem:[%s145 + $0x58] sm:$0xff] %vm167, %v338
      %373 = vst.msk [vmem:[%s145 + $0x60] sm:$0xff] %vm167, %v343
      %374 = vst.msk [vmem:[%s145 + $0x68] sm:$0xff] %vm167, %v348
      %375 = vst.msk [vmem:[%s145 + $0x70] sm:$0xff] %vm167, %v353
      %376 = vst.msk [vmem:[%s145 + $0x78] sm:$0xff] %vm167, %v358
      %s377 = smul.u32 16, %s13
      %p378 = scmp.lt.s32.totalorder %s377, 31
      %s379 = scalar_select %p378, %s377, 31
      %s380 = smul.addr %s379, 8
      %s381 = scalar_lea.vmem %s2, %s380
      // Predicated region
      $region29: #{tpu_custom_call.1} parent=27 // pred_check
        %p382 = pneg %p78
      $region30: #{tpu_custom_call.1} parent=27 // pred_check_branch
        %384 = sbr.rel (%p382) target = $region32
      $region31: #{tpu_custom_call.1} parent=27 // pred_region
        %s385 = smul.u32 16, %s13
      $region32: #{tpu_custom_call.1} parent=27 // pred_fallthru
        _
    $region28: #{tpu_custom_call.1} parent=5 // pred_fallthru
      _
    %p386 = scmp.le.s32.totalorder 2, %s8
    // Predicated region
    $region33: #{tpu_custom_call.1} parent=5 // pred_check
      %p387 = pneg %p386
    $region34: #{tpu_custom_call.1} parent=5 // pred_check_branch
      %389 = sbr.rel (%p387) target = $region36
    $region35: #{tpu_custom_call.1} parent=5 // pred_region
      %s390 = ssub.s32 %s8, 2
      // Predicated region
      $region37: #{tpu_custom_call.1} parent=35 // pred_check
        %p391 = pneg %p84
      $region38: #{tpu_custom_call.1} parent=35 // pred_check_branch
        %393 = sbr.rel (%p391) target = $region40
      $region39: #{tpu_custom_call.1} parent=35 // pred_region
        %s394 = smul.u32 16, %s14
        %p395 = scmp.lt.s32.totalorder %s394, 31
        %s396 = scalar_select %p395, %s394, 31
        %s397 = smul.addr %s396, 8
        %s398 = scalar_lea.vmem %s2, %s397
      $region40: #{tpu_custom_call.1} parent=35 // pred_fallthru
        _
    $region36: #{tpu_custom_call.1} parent=5 // pred_fallthru
      _
  $region6: #{tpu_custom_call.1} parent=0 // loop_footer
    %s12 = sadd.s32 1, %s8
  $region7: #{tpu_custom_call.1} parent=0 // loop_footer_branch
    %7 = sbr.rel target = $region3
  $region8: #{tpu_custom_call.1} parent=0 // loop_exit
    _

</llo_original>
